<compile_context>
chip_gen: v7x
topology: tpu7x:2x2x1
jax: 0.10.0
libtpu: 0.0.40
codegen_flags: <defaults>
</compile_context>

<pallas_src>
import jax
import jax.numpy as jnp
from jax.experimental import pallas as pl
from jax.experimental.pallas import tpu as pltpu

N_OBSERVATIONS = 4    # CartPole-v1 observation dim
N_ACTIONS = 2         # CartPole-v1 action dim
HIDDEN = 128
LANE = 128            # TPU lane width; output head padded to this for dense stores
TILE_B = 256          # batch tile: multiple of 256 (v6e/v7x MXU) and of 128 (v5e)


def dqn_kernel(x_ref, w1_ref, b1_ref, w2_ref, b2_ref, w3_ref, b3_ref, o_ref):
    # x_ref: (TILE_B, N_OBSERVATIONS); weights resident across grid steps.
    x = x_ref[...]
    h1 = jnp.dot(x, w1_ref[...], preferred_element_type=jnp.float32)     # (TILE_B, 128)
    h1 = jnp.maximum(h1 + b1_ref[...], 0.0)                              # relu(fc1)
    h2 = jnp.dot(h1, w2_ref[...], preferred_element_type=jnp.float32)    # (TILE_B, 128)
    h2 = jnp.maximum(h2 + b2_ref[...], 0.0)                              # relu(fc2)
    out = jnp.dot(h2, w3_ref[...], preferred_element_type=jnp.float32)   # (TILE_B, 128) lane-dense
    o_ref[...] = (out + b3_ref[...]).astype(o_ref.dtype)                 # fc3 (no relu)


def dqn_forward(x, params, *, tile_b=TILE_B):
    w1, b1, w2, b2, w3, b3 = params
    batch = x.shape[0]

    # Lane-dense output head: pad (128, 2) -> (128, 128) with zero columns.
    w3p = jnp.zeros((HIDDEN, LANE), w3.dtype).at[:, :N_ACTIONS].set(w3)
    b3p = jnp.zeros((1, LANE), b3.dtype).at[:, :N_ACTIONS].set(b3)

    # Pad batch to a multiple of the tile (zero rows; sliced off afterwards).
    n_tiles = pl.cdiv(batch, tile_b)
    padded_b = n_tiles * tile_b
    if padded_b != batch:
        x = jnp.pad(x, ((0, padded_b - batch), (0, 0)))

    # Advisory cost estimate for XLA scheduling around this small custom call.
    flops = 2 * padded_b * (N_OBSERVATIONS * HIDDEN + HIDDEN * HIDDEN + HIDDEN * LANE)
    bytes_accessed = 4 * (x.size + w1.size + b1.size + w2.size + b2.size
                          + w3p.size + b3p.size + padded_b * LANE)

    resident = lambda i: (0, 0)   # weights/biases: same block every grid step
    out_padded = pl.pallas_call(
        dqn_kernel,
        out_shape=jax.ShapeDtypeStruct((padded_b, LANE), jnp.float32),
        grid=(n_tiles,),
        in_specs=[
            pl.BlockSpec((tile_b, N_OBSERVATIONS), lambda i: (i, 0)),   # x tile
            pl.BlockSpec((N_OBSERVATIONS, HIDDEN), resident),           # w1
            pl.BlockSpec((1, HIDDEN), resident),                        # b1
            pl.BlockSpec((HIDDEN, HIDDEN), resident),                   # w2
            pl.BlockSpec((1, HIDDEN), resident),                        # b2
            pl.BlockSpec((HIDDEN, LANE), resident),                     # w3 (padded)
            pl.BlockSpec((1, LANE), resident),                          # b3 (padded)
        ],
        out_specs=pl.BlockSpec((tile_b, LANE), lambda i: (i, 0)),
        compiler_params=pltpu.CompilerParams(
            dimension_semantics=("parallel",)),
        cost_estimate=pl.CostEstimate(
            flops=flops, transcendentals=0, bytes_accessed=int(bytes_accessed)),
    )(x, w1, b1, w2, b2, w3p, b3p)

    # Drop padded rows and padded action lanes.
    return out_padded[:batch, :N_ACTIONS]


def init_params(key):
    """Deterministic synthetic init. Weights stored as (in, out) = torch weight.T."""
    k1, k2, k3, k4, k5, k6 = jax.random.split(key, 6)

    def linear_init(kw, kb, fan_in, fan_out):
        # mimic torch.nn.Linear default: U(-1/sqrt(fan_in), 1/sqrt(fan_in))
        bound = 1.0 / jnp.sqrt(jnp.float32(fan_in))
        w = jax.random.uniform(kw, (fan_in, fan_out), jnp.float32, -bound, bound)
        b = jax.random.uniform(kb, (1, fan_out), jnp.float32, -bound, bound)
        return w, b

    w1, b1 = linear_init(k1, k2, N_OBSERVATIONS, HIDDEN)
    w2, b2 = linear_init(k3, k4, HIDDEN, HIDDEN)
    w3, b3 = linear_init(k5, k6, HIDDEN, N_ACTIONS)
    return (w1, b1, w2, b2, w3, b3)


def dqn_reference(x, params):
    w1, b1, w2, b2, w3, b3 = params
    h1 = jnp.maximum(x @ w1 + b1, 0.0)
    h2 = jnp.maximum(h1 @ w2 + b2, 0.0)
    return h2 @ w3 + b3


if __name__ == "__main__":
    key = jax.random.PRNGKey(0)
    k_params, k_x = jax.random.split(key)

    params = init_params(k_params)
    batch = 8   # tiny acting-path batch; kernel pads it to one TILE_B tile
    x = jax.random.normal(k_x, (batch, N_OBSERVATIONS), jnp.float32)

    out = dqn_forward(x, params)
    out = jax.block_until_ready(out)

    ref = dqn_reference(x, params)
    assert out.shape == (batch, N_ACTIONS)
    assert jnp.allclose(out, ref, atol=1e-5, rtol=1e-5)

    # Also exercise a multi-tile, non-divisible batch (grid > 1, padded tail).
    big_batch = 3 * TILE_B + 37
    xb = jax.random.normal(jax.random.PRNGKey(1), (big_batch, N_OBSERVATIONS), jnp.float32)
    out_b = jax.block_until_ready(dqn_forward(xb, params))
    assert out_b.shape == (big_batch, N_ACTIONS)
    assert jnp.allclose(out_b, dqn_reference(xb, params), atol=1e-5, rtol=1e-5)

    print("KERNEL_OK")
</pallas_src>

<mosaic_0001>
module attributes {stable_mosaic.version = 11 : i64} {
  func.func @dqn_kernel(%arg0: i32, %arg1: memref<256x4xf32, #tpu.memory_space<vmem>>, %arg2: memref<4x128xf32, #tpu.memory_space<vmem>>, %arg3: memref<1x128xf32, #tpu.memory_space<vmem>>, %arg4: memref<128x128xf32, #tpu.memory_space<vmem>>, %arg5: memref<1x128xf32, #tpu.memory_space<vmem>>, %arg6: memref<128x128xf32, #tpu.memory_space<vmem>>, %arg7: memref<1x128xf32, #tpu.memory_space<vmem>>, %arg8: memref<256x128xf32, #tpu.memory_space<vmem>>) attributes {dimension_semantics = [#tpu.dimension_semantics<parallel>], iteration_bounds = array<i64: 1>, scalar_prefetch = 0 : i64, scratch_operands = 0 : i64, tpu.core_type = #tpu.core_type<tc>, window_params = [{transform_indices = @transform_0, window_bounds = array<i64: 256, 4>}, {pipeline_mode = #tpu.pipeline_mode<synchronous>, transform_indices = @transform_1, window_bounds = array<i64: 4, 128>}, {pipeline_mode = #tpu.pipeline_mode<synchronous>, transform_indices = @transform_2, window_bounds = array<i64: 1, 128>}, {pipeline_mode = #tpu.pipeline_mode<synchronous>, transform_indices = @transform_3, window_bounds = array<i64: 128, 128>}, {pipeline_mode = #tpu.pipeline_mode<synchronous>, transform_indices = @transform_4, window_bounds = array<i64: 1, 128>}, {pipeline_mode = #tpu.pipeline_mode<synchronous>, transform_indices = @transform_5, window_bounds = array<i64: 128, 128>}, {pipeline_mode = #tpu.pipeline_mode<synchronous>, transform_indices = @transform_6, window_bounds = array<i64: 1, 128>}, {transform_indices = @transform_7, window_bounds = array<i64: 256, 128>}]} {
    %c0 = arith.constant 0 : index
    %c0_0 = arith.constant 0 : index
    %0 = vector.load %arg1[%c0, %c0_0] : memref<256x4xf32, #tpu.memory_space<vmem>>, vector<256x4xf32>
    %c0_1 = arith.constant 0 : index
    %c0_2 = arith.constant 0 : index
    %1 = vector.load %arg2[%c0_1, %c0_2] : memref<4x128xf32, #tpu.memory_space<vmem>>, vector<4x128xf32>
    %cst = arith.constant dense<0.000000e+00> : vector<256x128xf32>
    %2 = tpu.matmul %0, %1, %cst {dimension_numbers = #tpu.dot_dimension_numbers<[1], [0], [0], [1], [0, 0, 1, 1], [], []>} : vector<256x4xf32>, vector<4x128xf32>, vector<256x128xf32> -> vector<256x128xf32>
    %c0_3 = arith.constant 0 : index
    %c0_4 = arith.constant 0 : index
    %3 = vector.load %arg3[%c0_3, %c0_4] : memref<1x128xf32, #tpu.memory_space<vmem>>, vector<1x128xf32>
    %4 = vector.broadcast %3 : vector<1x128xf32> to vector<256x128xf32>
    %5 = arith.addf %2, %4 : vector<256x128xf32>
    %cst_5 = arith.constant 0.000000e+00 : f32
    %6 = vector.broadcast %cst_5 : f32 to vector<256x128xf32>
    %7 = arith.maximumf %5, %6 : vector<256x128xf32>
    %c0_6 = arith.constant 0 : index
    %c0_7 = arith.constant 0 : index
    %8 = vector.load %arg4[%c0_6, %c0_7] : memref<128x128xf32, #tpu.memory_space<vmem>>, vector<128x128xf32>
    %cst_8 = arith.constant dense<0.000000e+00> : vector<256x128xf32>
    %9 = tpu.matmul %7, %8, %cst_8 {dimension_numbers = #tpu.dot_dimension_numbers<[1], [0], [0], [1], [0, 0, 1, 1], [], []>} : vector<256x128xf32>, vector<128x128xf32>, vector<256x128xf32> -> vector<256x128xf32>
    %c0_9 = arith.constant 0 : index
    %c0_10 = arith.constant 0 : index
    %10 = vector.load %arg5[%c0_9, %c0_10] : memref<1x128xf32, #tpu.memory_space<vmem>>, vector<1x128xf32>
    %11 = vector.broadcast %10 : vector<1x128xf32> to vector<256x128xf32>
    %12 = arith.addf %9, %11 : vector<256x128xf32>
    %cst_11 = arith.constant 0.000000e+00 : f32
    %13 = vector.broadcast %cst_11 : f32 to vector<256x128xf32>
    %14 = arith.maximumf %12, %13 : vector<256x128xf32>
    %c0_12 = arith.constant 0 : index
    %c0_13 = arith.constant 0 : index
    %15 = vector.load %arg6[%c0_12, %c0_13] : memref<128x128xf32, #tpu.memory_space<vmem>>, vector<128x128xf32>
    %cst_14 = arith.constant dense<0.000000e+00> : vector<256x128xf32>
    %16 = tpu.matmul %14, %15, %cst_14 {dimension_numbers = #tpu.dot_dimension_numbers<[1], [0], [0], [1], [0, 0, 1, 1], [], []>} : vector<256x128xf32>, vector<128x128xf32>, vector<256x128xf32> -> vector<256x128xf32>
    %c0_15 = arith.constant 0 : index
    %c0_16 = arith.constant 0 : index
    %17 = vector.load %arg7[%c0_15, %c0_16] : memref<1x128xf32, #tpu.memory_space<vmem>>, vector<1x128xf32>
    %18 = vector.broadcast %17 : vector<1x128xf32> to vector<256x128xf32>
    %19 = arith.addf %16, %18 : vector<256x128xf32>
    %c0_17 = arith.constant 0 : index
    %c0_18 = arith.constant 0 : index
    %20 = vector.load %arg8[%c0_17, %c0_18] : memref<256x128xf32, #tpu.memory_space<vmem>>, vector<256x128xf32>
    tpu.vector_store %arg8[%c0_17, %c0_18], %19 {strides = array<i32>} : memref<256x128xf32, #tpu.memory_space<vmem>>, vector<256x128xf32>,
    return
  }
  func.func @transform_0(%arg0: i32) -> (i32, i32) {
    %c0_i32 = arith.constant 0 : i32
    %c0_i32_0 = arith.constant 0 : i32
    return %arg0, %c0_i32 : i32, i32
  }
  func.func @transform_1(%arg0: i32) -> (i32, i32) {
    %c0_i32 = arith.constant 0 : i32
    %c0_i32_0 = arith.constant 0 : i32
    %c0_i32_1 = arith.constant 0 : i32
    return %c0_i32, %c0_i32_0 : i32, i32
  }
  func.func @transform_2(%arg0: i32) -> (i32, i32) {
    %c0_i32 = arith.constant 0 : i32
    %c0_i32_0 = arith.constant 0 : i32
    %c0_i32_1 = arith.constant 0 : i32
    return %c0_i32, %c0_i32_0 : i32, i32
  }
  func.func @transform_3(%arg0: i32) -> (i32, i32) {
    %c0_i32 = arith.constant 0 : i32
    %c0_i32_0 = arith.constant 0 : i32
    %c0_i32_1 = arith.constant 0 : i32
    return %c0_i32, %c0_i32_0 : i32, i32
  }
  func.func @transform_4(%arg0: i32) -> (i32, i32) {
    %c0_i32 = arith.constant 0 : i32
    %c0_i32_0 = arith.constant 0 : i32
    %c0_i32_1 = arith.constant 0 : i32
    return %c0_i32, %c0_i32_0 : i32, i32
  }
  func.func @transform_5(%arg0: i32) -> (i32, i32) {
    %c0_i32 = arith.constant 0 : i32
    %c0_i32_0 = arith.constant 0 : i32
    %c0_i32_1 = arith.constant 0 : i32
    return %c0_i32, %c0_i32_0 : i32, i32
  }
  func.func @transform_6(%arg0: i32) -> (i32, i32) {
    %c0_i32 = arith.constant 0 : i32
    %c0_i32_0 = arith.constant 0 : i32
    %c0_i32_1 = arith.constant 0 : i32
    return %c0_i32, %c0_i32_0 : i32, i32
  }
  func.func @transform_7(%arg0: i32) -> (i32, i32) {
    %c0_i32 = arith.constant 0 : i32
    %c0_i32_0 = arith.constant 0 : i32
    return %arg0, %c0_i32 : i32, i32
  }
}

</mosaic_0001>

<llo_original>
// kernel: tpu_custom_call.1
$region0: #{tpu_custom_call.1}
  #allocation0 [shape = 'u32[]', space=smem, size = 0x4, offset = 0x4, fixed_abs, tag = 'smem constant byte address 0x4 - core index']
  #allocation1 [shape = 'u32[144,128]{1,0:T(1,128)}', space=vmem, size = 0x12000, scoped, tag = 'internal scratch']
  %s0 = inlined_call_operand.vmem [shape: f32[256,4], index: 0, kind: input, shape index: {}]
  %s1 = inlined_call_operand.vmem [shape: f32[4,128], index: 1, kind: input, shape index: {}]
  %s2 = inlined_call_operand.vmem [shape: f32[1,128], index: 2, kind: input, shape index: {}]
  %s3 = inlined_call_operand.vmem [shape: f32[128,128], index: 3, kind: input, shape index: {}]
  %s4 = inlined_call_operand.vmem [shape: f32[1,128], index: 4, kind: input, shape index: {}]
  %s5 = inlined_call_operand.vmem [shape: f32[128,128], index: 5, kind: input, shape index: {}]
  %s6 = inlined_call_operand.vmem [shape: f32[1,128], index: 6, kind: input, shape index: {}]
  %s7 = inlined_call_operand.hbm [shape: f32[256,128], index: 7, kind: output, shape index: {}]
  %s8 = sld [smem:[#allocation0]]
  $region38: #{tpu_custom_call.1} parent=0
    _
  %s10 = ssub.s32 1, %s8
  %s11 = scalar_select 0, %s10, %s8
  $region1: #{tpu_custom_call.1} parent=0
    #allocation2 [shape = 'u8[131072]{0}', space=vmem, size = 0x20000, scoped, tag = 'output window, operand 0, single buffered']
    #allocation3 [shape = 's32[1]{0}', space=sflag, size = 0x4, scoped, tag = 'scoped memory for tpu_custom_call.1']
    %12 = vsyncpa [#allocation3], 0
    // Predicated region
    $region2: #{tpu_custom_call.1} parent=1 // pred_check
      _
    $region3: #{tpu_custom_call.1} parent=1 // pred_check_branch
      %14 = sbr.rel (0) target = $region5
    $region4: #{tpu_custom_call.1} parent=1 // pred_region
      _
    $region5: #{tpu_custom_call.1} parent=1 // pred_fallthru
      _
    // Predicated region
    $region6: #{tpu_custom_call.1} parent=1 // pred_check
      _
    $region7: #{tpu_custom_call.1} parent=1 // pred_check_branch
      %16 = sbr.rel (0) target = $region9
    $region8: #{tpu_custom_call.1} parent=1 // pred_region
      _
    $region9: #{tpu_custom_call.1} parent=1 // pred_fallthru
      _
    // Predicated region
    $region10: #{tpu_custom_call.1} parent=1 // pred_check
      _
    $region11: #{tpu_custom_call.1} parent=1 // pred_check_branch
      %18 = sbr.rel (0) target = $region13
    $region12: #{tpu_custom_call.1} parent=1 // pred_region
      _
    $region13: #{tpu_custom_call.1} parent=1 // pred_fallthru
      _
    // Predicated region
    $region14: #{tpu_custom_call.1} parent=1 // pred_check
      _
    $region15: #{tpu_custom_call.1} parent=1 // pred_check_branch
      %20 = sbr.rel (0) target = $region17
    $region16: #{tpu_custom_call.1} parent=1 // pred_region
      _
    $region17: #{tpu_custom_call.1} parent=1 // pred_fallthru
      _
    // Predicated region
    $region18: #{tpu_custom_call.1} parent=1 // pred_check
      _
    $region19: #{tpu_custom_call.1} parent=1 // pred_check_branch
      %22 = sbr.rel (0) target = $region21
    $region20: #{tpu_custom_call.1} parent=1 // pred_region
      _
    $region21: #{tpu_custom_call.1} parent=1 // pred_fallthru
      _
    // Predicated region
    $region22: #{tpu_custom_call.1} parent=1 // pred_check
      _
    $region23: #{tpu_custom_call.1} parent=1 // pred_check_branch
      %24 = sbr.rel (0) target = $region25
    $region24: #{tpu_custom_call.1} parent=1 // pred_region
      _
    $region25: #{tpu_custom_call.1} parent=1 // pred_fallthru
      _
    // Predicated region
    $region26: #{tpu_custom_call.1} parent=1 // pred_check
      _
    $region27: #{tpu_custom_call.1} parent=1 // pred_check_branch
      %26 = sbr.rel (0) target = $region29
    $region28: #{tpu_custom_call.1} parent=1 // pred_region
      _
    $region29: #{tpu_custom_call.1} parent=1 // pred_fallthru
      _
    %v27 = vld [vmem:[%s0] sm:$0xff]
    %v28 = vld [vmem:[%s0 + $0x8] sm:$0xff]
    %v29 = vld [vmem:[%s0 + $0x10] sm:$0xff]
    %v30 = vld [vmem:[%s0 + $0x18] sm:$0xff]
    %v31 = vld [vmem:[%s0 + $0x20] sm:$0xff]
    %v32 = vld [vmem:[%s0 + $0x28] sm:$0xff]
    %v33 = vld [vmem:[%s0 + $0x30] sm:$0xff]
    %v34 = vld [vmem:[%s0 + $0x38] sm:$0xff]
    %v35 = vld [vmem:[%s0 + $0x40] sm:$0xff]
    %v36 = vld [vmem:[%s0 + $0x48] sm:$0xff]
    %v37 = vld [vmem:[%s0 + $0x50] sm:$0xff]
    %v38 = vld [vmem:[%s0 + $0x58] sm:$0xff]
    %v39 = vld [vmem:[%s0 + $0x60] sm:$0xff]
    %v40 = vld [vmem:[%s0 + $0x68] sm:$0xff]
    %v41 = vld [vmem:[%s0 + $0x70] sm:$0xff]
    %v42 = vld [vmem:[%s0 + $0x78] sm:$0xff]
    %v43 = vld [vmem:[%s0 + $0x80] sm:$0xff]
    %v44 = vld [vmem:[%s0 + $0x88] sm:$0xff]
    %v45 = vld [vmem:[%s0 + $0x90] sm:$0xff]
    %v46 = vld [vmem:[%s0 + $0x98] sm:$0xff]
    %v47 = vld [vmem:[%s0 + $0xa0] sm:$0xff]
    %v48 = vld [vmem:[%s0 + $0xa8] sm:$0xff]
    %v49 = vld [vmem:[%s0 + $0xb0] sm:$0xff]
    %v50 = vld [vmem:[%s0 + $0xb8] sm:$0xff]
    %v51 = vld [vmem:[%s0 + $0xc0] sm:$0xff]
    %v52 = vld [vmem:[%s0 + $0xc8] sm:$0xff]
    %v53 = vld [vmem:[%s0 + $0xd0] sm:$0xff]
    %v54 = vld [vmem:[%s0 + $0xd8] sm:$0xff]
    %v55 = vld [vmem:[%s0 + $0xe0] sm:$0xff]
    %v56 = vld [vmem:[%s0 + $0xe8] sm:$0xff]
    %v57 = vld [vmem:[%s0 + $0xf0] sm:$0xff]
    %v58 = vld [vmem:[%s0 + $0xf8] sm:$0xff]
    %v59 = vld [vmem:[%s1] sm:$0xf]
    %v60 = vld [vmem:[%s2] sm:$0x1]
    %v62 = vlaneseq
    %v63 = vshrl.u32 %v62, 7
    %v64 = vsub.s32 0, %v63
    %v65 = vrot.slane %v60, %v64
    %vm67 = vcmask 31744
    %v69 = vsel %vm67, %v27, 0
    %v72 = vsel %vm67, %v28, 0
    %v75 = vsel %vm67, %v29, 0
    %v78 = vsel %vm67, %v30, 0
    %v81 = vsel %vm67, %v31, 0
    %v84 = vsel %vm67, %v32, 0
    %v87 = vsel %vm67, %v33, 0
    %v90 = vsel %vm67, %v34, 0
    %v93 = vsel %vm67, %v35, 0
    %v96 = vsel %vm67, %v36, 0
    %v99 = vsel %vm67, %v37, 0
    %v102 = vsel %vm67, %v38, 0
    %v105 = vsel %vm67, %v39, 0
    %v108 = vsel %vm67, %v40, 0
    %v111 = vsel %vm67, %v41, 0
    %v114 = vsel %vm67, %v42, 0
    %v117 = vsel %vm67, %v43, 0
    %v120 = vsel %vm67, %v44, 0
    %v123 = vsel %vm67, %v45, 0
    %v126 = vsel %vm67, %v46, 0
    %v129 = vsel %vm67, %v47, 0
    %v132 = vsel %vm67, %v48, 0
    %v135 = vsel %vm67, %v49, 0
    %v138 = vsel %vm67, %v50, 0
    %v141 = vsel %vm67, %v51, 0
    %v144 = vsel %vm67, %v52, 0
    %v147 = vsel %vm67, %v53, 0
    %v150 = vsel %vm67, %v54, 0
    %v153 = vsel %vm67, %v55, 0
    %v156 = vsel %vm67, %v56, 0
    %v159 = vsel %vm67, %v57, 0
    %v162 = vsel %vm67, %v58, 0
    %vm164 = vcmask 1043456
    %v166 = vsel %vm164, %v59, 0
    %168 = vmatprep.subr.mxu0 0.0
    %169 = vmatpush1.msra.mxu0 %v166
    %170 = vmatprep.subr.mxu0 0.0
    %171 = vmatpush1.msra.mxu0 0.0
    %172 = vmatprep.subr.mxu0 0.0
    %173 = vmatpush1.msra.mxu0 0.0
    %174 = vmatprep.subr.mxu0 0.0
    %175 = vmatpush1.msra.mxu0 0.0
    %176 = vmatprep.subr.mxu0 0.0
    %177 = vmatpush1.msra.mxu0 0.0
    %178 = vmatprep.subr.mxu0 0.0
    %179 = vmatpush1.msra.mxu0 0.0
    %180 = vmatprep.subr.mxu0 0.0
    %181 = vmatpush1.msra.mxu0 0.0
    %182 = vmatprep.subr.mxu0 0.0
    %183 = vmatpush1.msra.mxu0 0.0
    %184 = vmatprep.subr.mxu0 0.0
    %185 = vmatpush1.msra.mxu0 0.0
    %186 = vmatprep.subr.mxu0 0.0
    %187 = vmatpush1.msra.mxu0 0.0
    %188 = vmatprep.subr.mxu0 0.0
    %189 = vmatpush1.msra.mxu0 0.0
    %190 = vmatprep.subr.mxu0 0.0
    %191 = vmatpush1.msra.mxu0 0.0
    %192 = vmatprep.subr.mxu0 0.0
    %193 = vmatpush1.msra.mxu0 0.0
    %194 = vmatprep.subr.mxu0 0.0
    %195 = vmatpush1.msra.mxu0 0.0
    %196 = vmatprep.subr.mxu0 0.0
    %197 = vmatpush1.msra.mxu0 0.0
    %198 = vmatprep.subr.mxu0 0.0
    %199 = vmatpush1.msra.mxu0 0.0
    %200 = vmatprep.subr.mxu0 0.0
    %201 = vmatpush1.msra.mxu0 0.0
    %202 = vmatprep.subr.mxu0 0.0
    %203 = vmatpush1.msra.mxu0 0.0
    %204 = vmatprep.subr.mxu0 0.0
    %205 = vmatpush1.msra.mxu0 0.0
    %206 = vmatprep.subr.mxu0 0.0
    %207 = vmatpush1.msra.mxu0 0.0
    %208 = vmatprep.subr.mxu0 0.0
    %209 = vmatpush1.msra.mxu0 0.0
    %210 = vmatprep.subr.mxu0 0.0
    %211 = vmatpush1.msra.mxu0 0.0
    %212 = vmatprep.subr.mxu0 0.0
    %213 = vmatpush1.msra.mxu0 0.0
    %214 = vmatprep.subr.mxu0 0.0
    %215 = vmatpush1.msra.mxu0 0.0
    %216 = vmatprep.subr.mxu0 0.0
    %217 = vmatpush1.msra.mxu0 0.0
    %218 = vmatprep.subr.mxu0 0.0
    %219 = vmatpush1.msra.mxu0 0.0
    %220 = vmatprep.subr.mxu0 0.0
    %221 = vmatpush1.msra.mxu0 0.0
    %222 = vmatprep.subr.mxu0 0.0
    %223 = vmatpush1.msra.mxu0 0.0
    %224 = vmatprep.subr.mxu0 0.0
    %225 = vmatpush1.msra.mxu0 0.0
    %226 = vmatprep.subr.mxu0 0.0
    %227 = vmatpush1.msra.mxu0 0.0
    %228 = vmatprep.subr.mxu0 0.0
    %229 = vmatpush1.msra.mxu0 0.0
    %230 = vmatprep.subr.mxu0 0.0
    %231 = vmatpush1.msra.mxu0 0.0
    %232 = vmatprep.mubr.f32.mxu0 0.0
    %233 = vmatmul.mubr.f32.gmra.mrb[0].mxu0 %v69
    %v234 = vpop.f32.mrb[0].mxu0
    %v235 = vadd.f32 %v65, %v234
    %v236 = vpop.f32.mrb[0].mxu0
    %237 = vmatprep.mubr.f32.mxu0 0.0
    %238 = vmatmul.mubr.f32.gmra.mrb[0].mxu0 %v72
    %v239 = vpop.f32.mrb[0].mxu0
    %v240 = vadd.f32 %v65, %v239
    %v241 = vpop.f32.mrb[0].mxu0
    %242 = vmatprep.mubr.f32.mxu0 0.0
    %243 = vmatmul.mubr.f32.gmra.mrb[0].mxu0 %v75
    %v244 = vpop.f32.mrb[0].mxu0
    %v245 = vadd.f32 %v65, %v244
    %v246 = vpop.f32.mrb[0].mxu0
    %247 = vmatprep.mubr.f32.mxu0 0.0
    %248 = vmatmul.mubr.f32.gmra.mrb[0].mxu0 %v78
    %v249 = vpop.f32.mrb[0].mxu0
    %v250 = vadd.f32 %v65, %v249
    %v251 = vpop.f32.mrb[0].mxu0
    %252 = vmatprep.mubr.f32.mxu0 0.0
    %253 = vmatmul.mubr.f32.gmra.mrb[0].mxu0 %v81
    %v254 = vpop.f32.mrb[0].mxu0
    %v255 = vadd.f32 %v65, %v254
    %v256 = vpop.f32.mrb[0].mxu0
    %257 = vmatprep.mubr.f32.mxu0 0.0
    %258 = vmatmul.mubr.f32.gmra.mrb[0].mxu0 %v84
    %v259 = vpop.f32.mrb[0].mxu0
    %v260 = vadd.f32 %v65, %v259
    %v261 = vpop.f32.mrb[0].mxu0
    %262 = vmatprep.mubr.f32.mxu0 0.0
    %263 = vmatmul.mubr.f32.gmra.mrb[0].mxu0 %v87
    %v264 = vpop.f32.mrb[0].mxu0
    %v265 = vadd.f32 %v65, %v264
    %v266 = vpop.f32.mrb[0].mxu0
    %267 = vmatprep.mubr.f32.mxu0 0.0
    %268 = vmatmul.mubr.f32.gmra.mrb[0].mxu0 %v90
    %v269 = vpop.f32.mrb[0].mxu0
    %v270 = vadd.f32 %v65, %v269
    %v271 = vpop.f32.mrb[0].mxu0
    %272 = vmatprep.mubr.f32.mxu0 0.0
    %273 = vmatmul.mubr.f32.gmra.mrb[0].mxu0 %v93
    %v274 = vpop.f32.mrb[0].mxu0
    %v275 = vadd.f32 %v65, %v274
    %v276 = vpop.f32.mrb[0].mxu0
    %277 = vmatprep.mubr.f32.mxu0 0.0
    %278 = vmatmul.mubr.f32.gmra.mrb[0].mxu0 %v96
    %v279 = vpop.f32.mrb[0].mxu0
    %v280 = vadd.f32 %v65, %v279
    %v281 = vpop.f32.mrb[0].mxu0
    %282 = vmatprep.mubr.f32.mxu0 0.0
    %283 = vmatmul.mubr.f32.gmra.mrb[0].mxu0 %v99
    %v284 = vpop.f32.mrb[0].mxu0
    %v285 = vadd.f32 %v65, %v284
    %v286 = vpop.f32.mrb[0].mxu0
    %287 = vmatprep.mubr.f32.mxu0 0.0
    %288 = vmatmul.mubr.f32.gmra.mrb[0].mxu0 %v102
    %v289 = vpop.f32.mrb[0].mxu0
    %v290 = vadd.f32 %v65, %v289
    %v291 = vpop.f32.mrb[0].mxu0
    %292 = vmatprep.mubr.f32.mxu0 0.0
    %293 = vmatmul.mubr.f32.gmra.mrb[0].mxu0 %v105
    %v294 = vpop.f32.mrb[0].mxu0
    %v295 = vadd.f32 %v65, %v294
    %v296 = vpop.f32.mrb[0].mxu0
    %297 = vmatprep.mubr.f32.mxu0 0.0
    %298 = vmatmul.mubr.f32.gmra.mrb[0].mxu0 %v108
    %v299 = vpop.f32.mrb[0].mxu0
    %v300 = vadd.f32 %v65, %v299
    %v301 = vpop.f32.mrb[0].mxu0
    %302 = vmatprep.mubr.f32.mxu0 0.0
    %303 = vmatmul.mubr.f32.gmra.mrb[0].mxu0 %v111
    %v304 = vpop.f32.mrb[0].mxu0
    %v305 = vadd.f32 %v65, %v304
    %v306 = vpop.f32.mrb[0].mxu0
    %307 = vmatprep.mubr.f32.mxu0 0.0
    %308 = vmatmul.mubr.f32.gmra.mrb[0].mxu0 %v114
    %v309 = vpop.f32.mrb[0].mxu0
    %v310 = vadd.f32 %v65, %v309
    %v311 = vpop.f32.mrb[0].mxu0
    %312 = vmatprep.mubr.f32.mxu0 0.0
    %313 = vmatmul.mubr.f32.gmra.mrb[0].mxu0 %v117
    %v314 = vpop.f32.mrb[0].mxu0
    %v315 = vadd.f32 %v65, %v314
    %v316 = vpop.f32.mrb[0].mxu0
    %317 = vmatprep.mubr.f32.mxu0 0.0
    %318 = vmatmul.mubr.f32.gmra.mrb[0].mxu0 %v120
    %v319 = vpop.f32.mrb[0].mxu0
    %v320 = vadd.f32 %v65, %v319
    %v321 = vpop.f32.mrb[0].mxu0
    %322 = vmatprep.mubr.f32.mxu0 0.0
    %323 = vmatmul.mubr.f32.gmra.mrb[0].mxu0 %v123
    %v324 = vpop.f32.mrb[0].mxu0
    %v325 = vadd.f32 %v65, %v324
    %v326 = vpop.f32.mrb[0].mxu0
    %327 = vmatprep.mubr.f32.mxu0 0.0
    %328 = vmatmul.mubr.f32.gmra.mrb[0].mxu0 %v126
    %v329 = vpop.f32.mrb[0].mxu0
    %v330 = vadd.f32 %v65, %v329
    %v331 = vpop.f32.mrb[0].mxu0
    %332 = vmatprep.mubr.f32.mxu0 0.0
    %333 = vmatmul.mubr.f32.gmra.mrb[0].mxu0 %v129
    %v334 = vpop.f32.mrb[0].mxu0
    %v335 = vadd.f32 %v65, %v334
    %v336 = vpop.f32.mrb[0].mxu0
    %337 = vmatprep.mubr.f32.mxu0 0.0
    %338 = vmatmul.mubr.f32.gmra.mrb[0].mxu0 %v132
    %v339 = vpop.f32.mrb[0].mxu0
    %v340 = vadd.f32 %v65, %v339
    %v341 = vpop.f32.mrb[0].mxu0
    %342 = vmatprep.mubr.f32.mxu0 0.0
    %343 = vmatmul.mubr.f32.gmra.mrb[0].mxu0 %v135
    %v344 = vpop.f32.mrb[0].mxu0
    %v345 = vadd.f32 %v65, %v344
    %v346 = vpop.f32.mrb[0].mxu0
    %347 = vmatprep.mubr.f32.mxu0 0.0
    %348 = vmatmul.mubr.f32.gmra.mrb[0].mxu0 %v138
    %v349 = vpop.f32.mrb[0].mxu0
    %v350 = vadd.f32 %v65, %v349
    %v351 = vpop.f32.mrb[0].mxu0
    %352 = vmatprep.mubr.f32.mxu0 0.0
    %353 = vmatmul.mubr.f32.gmra.mrb[0].mxu0 %v141
    %v354 = vpop.f32.mrb[0].mxu0
    %v355 = vadd.f32 %v65, %v354
    %v356 = vpop.f32.mrb[0].mxu0
    %357 = vmatprep.mubr.f32.mxu0 0.0
    %358 = vmatmul.mubr.f32.gmra.mrb[0].mxu0 %v144
    %v359 = vpop.f32.mrb[0].mxu0
    %v360 = vadd.f32 %v65, %v359
    %v361 = vpop.f32.mrb[0].mxu0
    %362 = vmatprep.mubr.f32.mxu0 0.0
    %363 = vmatmul.mubr.f32.gmra.mrb[0].mxu0 %v147
    %v364 = vpop.f32.mrb[0].mxu0
    %v365 = vadd.f32 %v65, %v364
    %v366 = vpop.f32.mrb[0].mxu0
    %367 = vmatprep.mubr.f32.mxu0 0.0
    %368 = vmatmul.mubr.f32.gmra.mrb[0].mxu0 %v150
    %v369 = vpop.f32.mrb[0].mxu0
    %v370 = vadd.f32 %v65, %v369
    %v371 = vpop.f32.mrb[0].mxu0
    %372 = vmatprep.mubr.f32.mxu0 0.0
    %373 = vmatmul.mubr.f32.gmra.mrb[0].mxu0 %v153
    %v374 = vpop.f32.mrb[0].mxu0
    %v375 = vadd.f32 %v65, %v374
    %v376 = vpop.f32.mrb[0].mxu0
    %377 = vmatprep.mubr.f32.mxu0 0.0
    %378 = vmatmul.mubr.f32.gmra.mrb[0].mxu0 %v156
    %v379 = vpop.f32.mrb[0].mxu0
    %v380 = vadd.f32 %v65, %v379
    %v381 = vpop.f32.mrb[0].mxu0
    %382 = vmatprep.mubr.f32.mxu0 0.0
    %383 = vmatmul.mubr.f32.gmra.mrb[0].mxu0 %v159
    %v384 = vpop.f32.mrb[0].mxu0
    %v385 = vadd.f32 %v65, %v384
    %v386 = vpop.f32.mrb[0].mxu0
    %387 = vmatprep.mubr.f32.mxu0 0.0
    %388 = vmatmul.mubr.f32.gmra.mrb[0].mxu0 %v162
    %v389 = vpop.f32.mrb[0].mxu0
    %v390 = vadd.f32 %v65, %v389
    %v391 = vpop.f32.mrb[0].mxu0
    %392 = vdwg.mxu0
    %v393 = vmax.f32 %v235, 0.0
    %v394 = vmax.f32 %v240, 0.0
    %v395 = vmax.f32 %v245, 0.0
    %v396 = vmax.f32 %v250, 0.0
    %v397 = vmax.f32 %v255, 0.0
    %v398 = vmax.f32 %v260, 0.0
    %v399 = vmax.f32 %v265, 0.0
    %v400 = vmax.f32 %v270, 0.0
    %v401 = vmax.f32 %v275, 0.0
    %v402 = vmax.f32 %v280, 0.0
    %v403 = vmax.f32 %v285, 0.0
    %v404 = vmax.f32 %v290, 0.0
    %v405 = vmax.f32 %v295, 0.0
    %v406 = vmax.f32 %v300, 0.0
    %v407 = vmax.f32 %v305, 0.0
    %v408 = vmax.f32 %v310, 0.0
    %v409 = vmax.f32 %v315, 0.0
    %v410 = vmax.f32 %v320, 0.0
    %v411 = vmax.f32 %v325, 0.0
    %v412 = vmax.f32 %v330, 0.0
    %v413 = vmax.f32 %v335, 0.0
    %v414 = vmax.f32 %v340, 0.0
    %v415 = vmax.f32 %v345, 0.0
    %v416 = vmax.f32 %v350, 0.0
    %v417 = vmax.f32 %v355, 0.0
    %v418 = vmax.f32 %v360, 0.0
    %v419 = vmax.f32 %v365, 0.0
    %v420 = vmax.f32 %v370, 0.0
    %v421 = vmax.f32 %v375, 0.0
    %v422 = vmax.f32 %v380, 0.0
    %v423 = vmax.f32 %v385, 0.0
    %v424 = vmax.f32 %v390, 0.0
    %v425 = vld [vmem:[%s3] sm:$0xff]
    %v426 = vld [vmem:[%s3 + $0x8] sm:$0xff]
    %v427 = vld [vmem:[%s3 + $0x10] sm:$0xff]
    %v428 = vld [vmem:[%s3 + $0x18] sm:$0xff]
    %v429 = vld [vmem:[%s3 + $0x20] sm:$0xff]
    %v430 = vld [vmem:[%s3 + $0x28] sm:$0xff]
    %v431 = vld [vmem:[%s3 + $0x30] sm:$0xff]
    %v432 = vld [vmem:[%s3 + $0x38] sm:$0xff]
    %v433 = vld [vmem:[%s3 + $0x40] sm:$0xff]
    %v434 = vld [vmem:[%s3 + $0x48] sm:$0xff]
    %v435 = vld [vmem:[%s3 + $0x50] sm:$0xff]
    %v436 = vld [vmem:[%s3 + $0x58] sm:$0xff]
    %v437 = vld [vmem:[%s3 + $0x60] sm:$0xff]
    %v438 = vld [vmem:[%s3 + $0x68] sm:$0xff]
    %v439 = vld [vmem:[%s3 + $0x70] sm:$0xff]
    %v440 = vld [vmem:[%s3 + $0x78] sm:$0xff]
    %v441 = vld [vmem:[%s4] sm:$0x1]
    %v443 = vlaneseq
    %v444 = vshrl.u32 %v443, 7
    %v445 = vsub.s32 0, %v444
    %v446 = vrot.slane %v441, %v445
    %448 = vmatprep.subr.mxu0 0.0
    %449 = vmatpush1.msra.mxu0 %v425
    %450 = vmatprep.subr.mxu0 0.0
    %451 = vmatpush1.msra.mxu0 %v426
    %452 = vmatprep.subr.mxu0 0.0
    %453 = vmatpush1.msra.mxu0 %v427
    %454 = vmatprep.subr.mxu0 0.0
    %455 = vmatpush1.msra.mxu0 %v428
    %456 = vmatprep.subr.mxu0 0.0
    %457 = vmatpush1.msra.mxu0 %v429
    %458 = vmatprep.subr.mxu0 0.0
    %459 = vmatpush1.msra.mxu0 %v430
    %460 = vmatprep.subr.mxu0 0.0
    %461 = vmatpush1.msra.mxu0 %v431
    %462 = vmatprep.subr.mxu0 0.0
    %463 = vmatpush1.msra.mxu0 %v432
    %464 = vmatprep.subr.mxu0 0.0
    %465 = vmatpush1.msra.mxu0 %v433
    %466 = vmatprep.subr.mxu0 0.0
    %467 = vmatpush1.msra.mxu0 %v434
    %468 = vmatprep.subr.mxu0 0.0
    %469 = vmatpush1.msra.mxu0 %v435
    %470 = vmatprep.subr.mxu0 0.0
    %471 = vmatpush1.msra.mxu0 %v436
    %472 = vmatprep.subr.mxu0 0.0
    %473 = vmatpush1.msra.mxu0 %v437
    %474 = vmatprep.subr.mxu0 0.0
    %475 = vmatpush1.msra.mxu0 %v438
    %476 = vmatprep.subr.mxu0 0.0
    %477 = vmatpush1.msra.mxu0 %v439
    %478 = vmatprep.subr.mxu0 0.0
    %479 = vmatpush1.msra.mxu0 %v440
    %480 = vmatprep.subr.mxu0 0.0
    %481 = vmatpush1.msra.mxu0 0.0
    %482 = vmatprep.subr.mxu0 0.0
    %483 = vmatpush1.msra.mxu0 0.0
    %484 = vmatprep.subr.mxu0 0.0
    %485 = vmatpush1.msra.mxu0 0.0
    %486 = vmatprep.subr.mxu0 0.0
    %487 = vmatpush1.msra.mxu0 0.0
    %488 = vmatprep.subr.mxu0 0.0
    %489 = vmatpush1.msra.mxu0 0.0
    %490 = vmatprep.subr.mxu0 0.0
    %491 = vmatpush1.msra.mxu0 0.0
    %492 = vmatprep.subr.mxu0 0.0
    %493 = vmatpush1.msra.mxu0 0.0
    %494 = vmatprep.subr.mxu0 0.0
    %495 = vmatpush1.msra.mxu0 0.0
    %496 = vmatprep.subr.mxu0 0.0
    %497 = vmatpush1.msra.mxu0 0.0
    %498 = vmatprep.subr.mxu0 0.0
    %499 = vmatpush1.msra.mxu0 0.0
    %500 = vmatprep.subr.mxu0 0.0
    %501 = vmatpush1.msra.mxu0 0.0
    %502 = vmatprep.subr.mxu0 0.0
    %503 = vmatpush1.msra.mxu0 0.0
    %504 = vmatprep.subr.mxu0 0.0
    %505 = vmatpush1.msra.mxu0 0.0
    %506 = vmatprep.subr.mxu0 0.0
    %507 = vmatpush1.msra.mxu0 0.0
    %508 = vmatprep.subr.mxu0 0.0
    %509 = vmatpush1.msra.mxu0 0.0
    %510 = vmatprep.subr.mxu0 0.0
    %511 = vmatpush1.msra.mxu0 0.0
    %512 = vmatprep.mubr.f32.mxu0 0.0
    %513 = vmatmul.mubr.f32.gmra.mrb[0].mxu0 %v393
    %v514 = vpop.f32.mrb[0].mxu0
    %v515 = vadd.f32 %v446, %v514
    %v516 = vpop.f32.mrb[0].mxu0
    %517 = vmatprep.mubr.f32.mxu0 0.0
    %518 = vmatmul.mubr.f32.gmra.mrb[0].mxu0 %v394
    %v519 = vpop.f32.mrb[0].mxu0
    %v520 = vadd.f32 %v446, %v519
    %v521 = vpop.f32.mrb[0].mxu0
    %522 = vmatprep.mubr.f32.mxu0 0.0
    %523 = vmatmul.mubr.f32.gmra.mrb[0].mxu0 %v395
    %v524 = vpop.f32.mrb[0].mxu0
    %v525 = vadd.f32 %v446, %v524
    %v526 = vpop.f32.mrb[0].mxu0
    %527 = vmatprep.mubr.f32.mxu0 0.0
    %528 = vmatmul.mubr.f32.gmra.mrb[0].mxu0 %v396
    %v529 = vpop.f32.mrb[0].mxu0
    %v530 = vadd.f32 %v446, %v529
    %v531 = vpop.f32.mrb[0].mxu0
    %532 = vmatprep.mubr.f32.mxu0 0.0
    %533 = vmatmul.mubr.f32.gmra.mrb[0].mxu0 %v397
    %v534 = vpop.f32.mrb[0].mxu0
    %v535 = vadd.f32 %v446, %v534
    %v536 = vpop.f32.mrb[0].mxu0
    %537 = vmatprep.mubr.f32.mxu0 0.0
    %538 = vmatmul.mubr.f32.gmra.mrb[0].mxu0 %v398
    %v539 = vpop.f32.mrb[0].mxu0
    %v540 = vadd.f32 %v446, %v539
    %v541 = vpop.f32.mrb[0].mxu0
    %542 = vmatprep.mubr.f32.mxu0 0.0
    %543 = vmatmul.mubr.f32.gmra.mrb[0].mxu0 %v399
    %v544 = vpop.f32.mrb[0].mxu0
    %v545 = vadd.f32 %v446, %v544
    %v546 = vpop.f32.mrb[0].mxu0
    %547 = vmatprep.mubr.f32.mxu0 0.0
    %548 = vmatmul.mubr.f32.gmra.mrb[0].mxu0 %v400
    %v549 = vpop.f32.mrb[0].mxu0
    %v550 = vadd.f32 %v446, %v549
    %v551 = vpop.f32.mrb[0].mxu0
    %552 = vmatprep.mubr.f32.mxu0 0.0
    %553 = vmatmul.mubr.f32.gmra.mrb[0].mxu0 %v401
    %v554 = vpop.f32.mrb[0].mxu0
    %v555 = vadd.f32 %v446, %v554
    %v556 = vpop.f32.mrb[0].mxu0
    %557 = vmatprep.mubr.f32.mxu0 0.0
    %558 = vmatmul.mubr.f32.gmra.mrb[0].mxu0 %v402
    %v559 = vpop.f32.mrb[0].mxu0
    %v560 = vadd.f32 %v446, %v559
    %v561 = vpop.f32.mrb[0].mxu0
    %562 = vmatprep.mubr.f32.mxu0 0.0
    %563 = vmatmul.mubr.f32.gmra.mrb[0].mxu0 %v403
    %v564 = vpop.f32.mrb[0].mxu0
    %v565 = vadd.f32 %v446, %v564
    %v566 = vpop.f32.mrb[0].mxu0
    %567 = vmatprep.mubr.f32.mxu0 0.0
    %568 = vmatmul.mubr.f32.gmra.mrb[0].mxu0 %v404
    %v569 = vpop.f32.mrb[0].mxu0
    %v570 = vadd.f32 %v446, %v569
    %v571 = vpop.f32.mrb[0].mxu0
    %572 = vmatprep.mubr.f32.mxu0 0.0
    %573 = vmatmul.mubr.f32.gmra.mrb[0].mxu0 %v405
    %v574 = vpop.f32.mrb[0].mxu0
    %v575 = vadd.f32 %v446, %v574
    %v576 = vpop.f32.mrb[0].mxu0
    %577 = vmatprep.mubr.f32.mxu0 0.0
    %578 = vmatmul.mubr.f32.gmra.mrb[0].mxu0 %v406
    %v579 = vpop.f32.mrb[0].mxu0
    %v580 = vadd.f32 %v446, %v579
    %v581 = vpop.f32.mrb[0].mxu0
    %582 = vmatprep.mubr.f32.mxu0 0.0
    %583 = vmatmul.mubr.f32.gmra.mrb[0].mxu0 %v407
    %v584 = vpop.f32.mrb[0].mxu0
    %v585 = vadd.f32 %v446, %v584
    %v586 = vpop.f32.mrb[0].mxu0
    %587 = vmatprep.mubr.f32.mxu0 0.0
    %588 = vmatmul.mubr.f32.gmra.mrb[0].mxu0 %v408
    %v589 = vpop.f32.mrb[0].mxu0
    %v590 = vadd.f32 %v446, %v589
    %v591 = vpop.f32.mrb[0].mxu0
    %592 = vmatprep.mubr.f32.mxu0 0.0
    %593 = vmatmul.mubr.f32.gmra.mrb[0].mxu0 %v409
    %v594 = vpop.f32.mrb[0].mxu0
    %v595 = vadd.f32 %v446, %v594
    %v596 = vpop.f32.mrb[0].mxu0
    %597 = vmatprep.mubr.f32.mxu0 0.0
    %598 = vmatmul.mubr.f32.gmra.mrb[0].mxu0 %v410
    %v599 = vpop.f32.mrb[0].mxu0
    %v600 = vadd.f32 %v446, %v599
    %v601 = vpop.f32.mrb[0].mxu0
    %602 = vmatprep.mubr.f32.mxu0 0.0
    %603 = vmatmul.mubr.f32.gmra.mrb[0].mxu0 %v411
    %v604 = vpop.f32.mrb[0].mxu0
    %v605 = vadd.f32 %v446, %v604
    %v606 = vpop.f32.mrb[0].mxu0
    %607 = vmatprep.mubr.f32.mxu0 0.0
    %608 = vmatmul.mubr.f32.gmra.mrb[0].mxu0 %v412
    %v609 = vpop.f32.mrb[0].mxu0
    %v610 = vadd.f32 %v446, %v609
    %v611 = vpop.f32.mrb[0].mxu0
    %612 = vmatprep.mubr.f32.mxu0 0.0
    %613 = vmatmul.mubr.f32.gmra.mrb[0].mxu0 %v413
    %v614 = vpop.f32.mrb[0].mxu0
    %v615 = vadd.f32 %v446, %v614
    %v616 = vpop.f32.mrb[0].mxu0
    %617 = vmatprep.mubr.f32.mxu0 0.0
    %618 = vmatmul.mubr.f32.gmra.mrb[0].mxu0 %v414
    %v619 = vpop.f32.mrb[0].mxu0
    %v620 = vadd.f32 %v446, %v619
    %v621 = vpop.f32.mrb[0].mxu0
    %622 = vmatprep.mubr.f32.mxu0 0.0
    %623 = vmatmul.mubr.f32.gmra.mrb[0].mxu0 %v415
    %v624 = vpop.f32.mrb[0].mxu0
    %v625 = vadd.f32 %v446, %v624
    %v626 = vpop.f32.mrb[0].mxu0
    %627 = vmatprep.mubr.f32.mxu0 0.0
    %628 = vmatmul.mubr.f32.gmra.mrb[0].mxu0 %v416
    %v629 = vpop.f32.mrb[0].mxu0
    %v630 = vadd.f32 %v446, %v629
    %v631 = vpop.f32.mrb[0].mxu0
    %632 = vmatprep.mubr.f32.mxu0 0.0
    %633 = vmatmul.mubr.f32.gmra.mrb[0].mxu0 %v417
    %v634 = vpop.f32.mrb[0].mxu0
    %v635 = vadd.f32 %v446, %v634
    %v636 = vpop.f32.mrb[0].mxu0
    %637 = vmatprep.mubr.f32.mxu0 0.0
    %638 = vmatmul.mubr.f32.gmra.mrb[0].mxu0 %v418
    %v639 = vpop.f32.mrb[0].mxu0
    %v640 = vadd.f32 %v446, %v639
    %v641 = vpop.f32.mrb[0].mxu0
    %642 = vmatprep.mubr.f32.mxu0 0.0
    %643 = vmatmul.mubr.f32.gmra.mrb[0].mxu0 %v419
    %v644 = vpop.f32.mrb[0].mxu0
    %v645 = vadd.f32 %v446, %v644
    %v646 = vpop.f32.mrb[0].mxu0
    %647 = vmatprep.mubr.f32.mxu0 0.0
    %648 = vmatmul.mubr.f32.gmra.mrb[0].mxu0 %v420
    %v649 = vpop.f32.mrb[0].mxu0
    %v650 = vadd.f32 %v446, %v649
    %v651 = vpop.f32.mrb[0].mxu0
    %652 = vmatprep.mubr.f32.mxu0 0.0
    %653 = vmatmul.mubr.f32.gmra.mrb[0].mxu0 %v421
    %v654 = vpop.f32.mrb[0].mxu0
    %v655 = vadd.f32 %v446, %v654
    %v656 = vpop.f32.mrb[0].mxu0
    %657 = vmatprep.mubr.f32.mxu0 0.0
    %658 = vmatmul.mubr.f32.gmra.mrb[0].mxu0 %v422
    %v659 = vpop.f32.mrb[0].mxu0
    %v660 = vadd.f32 %v446, %v659
    %v661 = vpop.f32.mrb[0].mxu0
    %662 = vmatprep.mubr.f32.mxu0 0.0
    %663 = vmatmul.mubr.f32.gmra.mrb[0].mxu0 %v423
    %v664 = vpop.f32.mrb[0].mxu0
    %v665 = vadd.f32 %v446, %v664
    %v666 = vpop.f32.mrb[0].mxu0
    %667 = vmatprep.mubr.f32.mxu0 0.0
    %668 = vmatmul.mubr.f32.gmra.mrb[0].mxu0 %v424
    %v669 = vpop.f32.mrb[0].mxu0
    %v670 = vadd.f32 %v446, %v669
    %v671 = vpop.f32.mrb[0].mxu0
    %672 = vdwg.mxu0
    %v673 = vmax.f32 %v515, 0.0
    %v674 = vmax.f32 %v520, 0.0
    %v675 = vmax.f32 %v525, 0.0
    %v676 = vmax.f32 %v530, 0.0
    %v677 = vmax.f32 %v535, 0.0
    %v678 = vmax.f32 %v540, 0.0
    %v679 = vmax.f32 %v545, 0.0
    %v680 = vmax.f32 %v550, 0.0
    %v681 = vmax.f32 %v555, 0.0
    %v682 = vmax.f32 %v560, 0.0
    %v683 = vmax.f32 %v565, 0.0
    %v684 = vmax.f32 %v570, 0.0
    %v685 = vmax.f32 %v575, 0.0
    %v686 = vmax.f32 %v580, 0.0
    %v687 = vmax.f32 %v585, 0.0
    %v688 = vmax.f32 %v590, 0.0
    %v689 = vmax.f32 %v595, 0.0
    %v690 = vmax.f32 %v600, 0.0
    %v691 = vmax.f32 %v605, 0.0
    %v692 = vmax.f32 %v610, 0.0
    %v693 = vmax.f32 %v615, 0.0
    %v694 = vmax.f32 %v620, 0.0
    %v695 = vmax.f32 %v625, 0.0
    %v696 = vmax.f32 %v630, 0.0
    %v697 = vmax.f32 %v635, 0.0
    %v698 = vmax.f32 %v640, 0.0
    %v699 = vmax.f32 %v645, 0.0
    %v700 = vmax.f32 %v650, 0.0
    %v701 = vmax.f32 %v655, 0.0
    %v702 = vmax.f32 %v660, 0.0
    %v703 = vmax.f32 %v665, 0.0
    %v704 = vmax.f32 %v670, 0.0
    %v705 = vld [vmem:[%s5] sm:$0xff]
    %v706 = vld [vmem:[%s5 + $0x8] sm:$0xff]
    %v707 = vld [vmem:[%s5 + $0x10] sm:$0xff]
    %v708 = vld [vmem:[%s5 + $0x18] sm:$0xff]
    %v709 = vld [vmem:[%s5 + $0x20] sm:$0xff]
    %v710 = vld [vmem:[%s5 + $0x28] sm:$0xff]
    %v711 = vld [vmem:[%s5 + $0x30] sm:$0xff]
    %v712 = vld [vmem:[%s5 + $0x38] sm:$0xff]
    %v713 = vld [vmem:[%s5 + $0x40] sm:$0xff]
    %v714 = vld [vmem:[%s5 + $0x48] sm:$0xff]
    %v715 = vld [vmem:[%s5 + $0x50] sm:$0xff]
    %v716 = vld [vmem:[%s5 + $0x58] sm:$0xff]
    %v717 = vld [vmem:[%s5 + $0x60] sm:$0xff]
    %v718 = vld [vmem:[%s5 + $0x68] sm:$0xff]
    %v719 = vld [vmem:[%s5 + $0x70] sm:$0xff]
    %v720 = vld [vmem:[%s5 + $0x78] sm:$0xff]
    %v721 = vld [vmem:[%s6] sm:$0x1]
    %v723 = vlaneseq
    %v724 = vshrl.u32 %v723, 7
    %v725 = vsub.s32 0, %v724
    %v726 = vrot.slane %v721, %v725
    %728 = vmatprep.subr.mxu0 0.0
    %729 = vmatpush1.msra.mxu0 %v705
    %730 = vmatprep.subr.mxu0 0.0
    %731 = vmatpush1.msra.mxu0 %v706
    %732 = vmatprep.subr.mxu0 0.0
    %733 = vmatpush1.msra.mxu0 %v707
    %734 = vmatprep.subr.mxu0 0.0
    %735 = vmatpush1.msra.mxu0 %v708
    %736 = vmatprep.subr.mxu0 0.0
    %737 = vmatpush1.msra.mxu0 %v709
    %738 = vmatprep.subr.mxu0 0.0
    %739 = vmatpush1.msra.mxu0 %v710
    %740 = vmatprep.subr.mxu0 0.0
    %741 = vmatpush1.msra.mxu0 %v711
    %742 = vmatprep.subr.mxu0 0.0
    %743 = vmatpush1.msra.mxu0 %v712
    %744 = vmatprep.subr.mxu0 0.0
    %745 = vmatpush1.msra.mxu0 %v713
    %746 = vmatprep.subr.mxu0 0.0
    %747 = vmatpush1.msra.mxu0 %v714
    %748 = vmatprep.subr.mxu0 0.0
    %749 = vmatpush1.msra.mxu0 %v715
    %750 = vmatprep.subr.mxu0 0.0
    %751 = vmatpush1.msra.mxu0 %v716
    %752 = vmatprep.subr.mxu0 0.0
    %753 = vmatpush1.msra.mxu0 %v717
    %754 = vmatprep.subr.mxu0 0.0
    %755 = vmatpush1.msra.mxu0 %v718
    %756 = vmatprep.subr.mxu0 0.0
    %757 = vmatpush1.msra.mxu0 %v719
    %758 = vmatprep.subr.mxu0 0.0
    %759 = vmatpush1.msra.mxu0 %v720
    %760 = vmatprep.subr.mxu0 0.0
    %761 = vmatpush1.msra.mxu0 0.0
    %762 = vmatprep.subr.mxu0 0.0
    %763 = vmatpush1.msra.mxu0 0.0
    %764 = vmatprep.subr.mxu0 0.0
    %765 = vmatpush1.msra.mxu0 0.0
    %766 = vmatprep.subr.mxu0 0.0
    %767 = vmatpush1.msra.mxu0 0.0
    %768 = vmatprep.subr.mxu0 0.0
    %769 = vmatpush1.msra.mxu0 0.0
    %770 = vmatprep.subr.mxu0 0.0
    %771 = vmatpush1.msra.mxu0 0.0
    %772 = vmatprep.subr.mxu0 0.0
    %773 = vmatpush1.msra.mxu0 0.0
    %774 = vmatprep.subr.mxu0 0.0
    %775 = vmatpush1.msra.mxu0 0.0
    %776 = vmatprep.subr.mxu0 0.0
    %777 = vmatpush1.msra.mxu0 0.0
    %778 = vmatprep.subr.mxu0 0.0
    %779 = vmatpush1.msra.mxu0 0.0
    %780 = vmatprep.subr.mxu0 0.0
    %781 = vmatpush1.msra.mxu0 0.0
    %782 = vmatprep.subr.mxu0 0.0
    %783 = vmatpush1.msra.mxu0 0.0
    %784 = vmatprep.subr.mxu0 0.0
    %785 = vmatpush1.msra.mxu0 0.0
    %786 = vmatprep.subr.mxu0 0.0
    %787 = vmatpush1.msra.mxu0 0.0
    %788 = vmatprep.subr.mxu0 0.0
    %789 = vmatpush1.msra.mxu0 0.0
    %790 = vmatprep.subr.mxu0 0.0
    %791 = vmatpush1.msra.mxu0 0.0
    %792 = vmatprep.mubr.f32.mxu0 0.0
    %793 = vmatmul.mubr.f32.gmra.mrb[0].mxu0 %v673
    %v794 = vpop.f32.mrb[0].mxu0
    %v795 = vadd.f32 %v726, %v794
    %v796 = vpop.f32.mrb[0].mxu0
    %797 = vmatprep.mubr.f32.mxu0 0.0
    %798 = vmatmul.mubr.f32.gmra.mrb[0].mxu0 %v674
    %v799 = vpop.f32.mrb[0].mxu0
    %v800 = vadd.f32 %v726, %v799
    %v801 = vpop.f32.mrb[0].mxu0
    %802 = vmatprep.mubr.f32.mxu0 0.0
    %803 = vmatmul.mubr.f32.gmra.mrb[0].mxu0 %v675
    %v804 = vpop.f32.mrb[0].mxu0
    %v805 = vadd.f32 %v726, %v804
    %v806 = vpop.f32.mrb[0].mxu0
    %807 = vmatprep.mubr.f32.mxu0 0.0
    %808 = vmatmul.mubr.f32.gmra.mrb[0].mxu0 %v676
    %v809 = vpop.f32.mrb[0].mxu0
    %v810 = vadd.f32 %v726, %v809
    %v811 = vpop.f32.mrb[0].mxu0
    %812 = vmatprep.mubr.f32.mxu0 0.0
    %813 = vmatmul.mubr.f32.gmra.mrb[0].mxu0 %v677
    %v814 = vpop.f32.mrb[0].mxu0
    %v815 = vadd.f32 %v726, %v814
    %v816 = vpop.f32.mrb[0].mxu0
    %817 = vmatprep.mubr.f32.mxu0 0.0
    %818 = vmatmul.mubr.f32.gmra.mrb[0].mxu0 %v678
    %v819 = vpop.f32.mrb[0].mxu0
    %v820 = vadd.f32 %v726, %v819
    %v821 = vpop.f32.mrb[0].mxu0
    %822 = vmatprep.mubr.f32.mxu0 0.0
    %823 = vmatmul.mubr.f32.gmra.mrb[0].mxu0 %v679
    %v824 = vpop.f32.mrb[0].mxu0
    %v825 = vadd.f32 %v726, %v824
    %v826 = vpop.f32.mrb[0].mxu0
    %827 = vmatprep.mubr.f32.mxu0 0.0
    %828 = vmatmul.mubr.f32.gmra.mrb[0].mxu0 %v680
    %v829 = vpop.f32.mrb[0].mxu0
    %v830 = vadd.f32 %v726, %v829
    %v831 = vpop.f32.mrb[0].mxu0
    %832 = vmatprep.mubr.f32.mxu0 0.0
    %833 = vmatmul.mubr.f32.gmra.mrb[0].mxu0 %v681
    %v834 = vpop.f32.mrb[0].mxu0
    %v835 = vadd.f32 %v726, %v834
    %v836 = vpop.f32.mrb[0].mxu0
    %837 = vmatprep.mubr.f32.mxu0 0.0
    %838 = vmatmul.mubr.f32.gmra.mrb[0].mxu0 %v682
    %v839 = vpop.f32.mrb[0].mxu0
    %v840 = vadd.f32 %v726, %v839
    %v841 = vpop.f32.mrb[0].mxu0
    %842 = vmatprep.mubr.f32.mxu0 0.0
    %843 = vmatmul.mubr.f32.gmra.mrb[0].mxu0 %v683
    %v844 = vpop.f32.mrb[0].mxu0
    %v845 = vadd.f32 %v726, %v844
    %v846 = vpop.f32.mrb[0].mxu0
    %847 = vmatprep.mubr.f32.mxu0 0.0
    %848 = vmatmul.mubr.f32.gmra.mrb[0].mxu0 %v684
    %v849 = vpop.f32.mrb[0].mxu0
    %v850 = vadd.f32 %v726, %v849
    %v851 = vpop.f32.mrb[0].mxu0
    %852 = vmatprep.mubr.f32.mxu0 0.0
    %853 = vmatmul.mubr.f32.gmra.mrb[0].mxu0 %v685
    %v854 = vpop.f32.mrb[0].mxu0
    %v855 = vadd.f32 %v726, %v854
    %v856 = vpop.f32.mrb[0].mxu0
    %857 = vmatprep.mubr.f32.mxu0 0.0
    %858 = vmatmul.mubr.f32.gmra.mrb[0].mxu0 %v686
    %v859 = vpop.f32.mrb[0].mxu0
    %v860 = vadd.f32 %v726, %v859
    %v861 = vpop.f32.mrb[0].mxu0
    %862 = vmatprep.mubr.f32.mxu0 0.0
    %863 = vmatmul.mubr.f32.gmra.mrb[0].mxu0 %v687
    %v864 = vpop.f32.mrb[0].mxu0
    %v865 = vadd.f32 %v726, %v864
    %v866 = vpop.f32.mrb[0].mxu0
    %867 = vmatprep.mubr.f32.mxu0 0.0
    %868 = vmatmul.mubr.f32.gmra.mrb[0].mxu0 %v688
    %v869 = vpop.f32.mrb[0].mxu0
    %v870 = vadd.f32 %v726, %v869
    %v871 = vpop.f32.mrb[0].mxu0
    %872 = vmatprep.mubr.f32.mxu0 0.0
    %873 = vmatmul.mubr.f32.gmra.mrb[0].mxu0 %v689
    %v874 = vpop.f32.mrb[0].mxu0
    %v875 = vadd.f32 %v726, %v874
    %v876 = vpop.f32.mrb[0].mxu0
    %877 = vmatprep.mubr.f32.mxu0 0.0
    %878 = vmatmul.mubr.f32.gmra.mrb[0].mxu0 %v690
    %v879 = vpop.f32.mrb[0].mxu0
    %v880 = vadd.f32 %v726, %v879
    %v881 = vpop.f32.mrb[0].mxu0
    %882 = vmatprep.mubr.f32.mxu0 0.0
    %883 = vmatmul.mubr.f32.gmra.mrb[0].mxu0 %v691
    %v884 = vpop.f32.mrb[0].mxu0
    %v885 = vadd.f32 %v726, %v884
    %v886 = vpop.f32.mrb[0].mxu0
    %887 = vmatprep.mubr.f32.mxu0 0.0
    %888 = vmatmul.mubr.f32.gmra.mrb[0].mxu0 %v692
    %v889 = vpop.f32.mrb[0].mxu0
    %v890 = vadd.f32 %v726, %v889
    %v891 = vpop.f32.mrb[0].mxu0
    %892 = vmatprep.mubr.f32.mxu0 0.0
    %893 = vmatmul.mubr.f32.gmra.mrb[0].mxu0 %v693
    %v894 = vpop.f32.mrb[0].mxu0
    %v895 = vadd.f32 %v726, %v894
    %v896 = vpop.f32.mrb[0].mxu0
    %897 = vmatprep.mubr.f32.mxu0 0.0
    %898 = vmatmul.mubr.f32.gmra.mrb[0].mxu0 %v694
    %v899 = vpop.f32.mrb[0].mxu0
    %v900 = vadd.f32 %v726, %v899
    %v901 = vpop.f32.mrb[0].mxu0
    %902 = vmatprep.mubr.f32.mxu0 0.0
    %903 = vmatmul.mubr.f32.gmra.mrb[0].mxu0 %v695
    %v904 = vpop.f32.mrb[0].mxu0
    %v905 = vadd.f32 %v726, %v904
    %v906 = vpop.f32.mrb[0].mxu0
    %907 = vmatprep.mubr.f32.mxu0 0.0
    %908 = vmatmul.mubr.f32.gmra.mrb[0].mxu0 %v696
    %v909 = vpop.f32.mrb[0].mxu0
    %v910 = vadd.f32 %v726, %v909
    %v911 = vpop.f32.mrb[0].mxu0
    %912 = vmatprep.mubr.f32.mxu0 0.0
    %913 = vmatmul.mubr.f32.gmra.mrb[0].mxu0 %v697
    %v914 = vpop.f32.mrb[0].mxu0
    %v915 = vadd.f32 %v726, %v914
    %v916 = vpop.f32.mrb[0].mxu0
    %917 = vmatprep.mubr.f32.mxu0 0.0
    %918 = vmatmul.mubr.f32.gmra.mrb[0].mxu0 %v698
    %v919 = vpop.f32.mrb[0].mxu0
    %v920 = vadd.f32 %v726, %v919
    %v921 = vpop.f32.mrb[0].mxu0
    %922 = vmatprep.mubr.f32.mxu0 0.0
    %923 = vmatmul.mubr.f32.gmra.mrb[0].mxu0 %v699
    %v924 = vpop.f32.mrb[0].mxu0
    %v925 = vadd.f32 %v726, %v924
    %v926 = vpop.f32.mrb[0].mxu0
    %927 = vmatprep.mubr.f32.mxu0 0.0
    %928 = vmatmul.mubr.f32.gmra.mrb[0].mxu0 %v700
    %v929 = vpop.f32.mrb[0].mxu0
    %v930 = vadd.f32 %v726, %v929
    %v931 = vpop.f32.mrb[0].mxu0
    %932 = vmatprep.mubr.f32.mxu0 0.0
    %933 = vmatmul.mubr.f32.gmra.mrb[0].mxu0 %v701
    %v934 = vpop.f32.mrb[0].mxu0
    %v935 = vadd.f32 %v726, %v934
    %v936 = vpop.f32.mrb[0].mxu0
    %937 = vmatprep.mubr.f32.mxu0 0.0
    %938 = vmatmul.mubr.f32.gmra.mrb[0].mxu0 %v702
    %v939 = vpop.f32.mrb[0].mxu0
    %v940 = vadd.f32 %v726, %v939
    %v941 = vpop.f32.mrb[0].mxu0
    %942 = vmatprep.mubr.f32.mxu0 0.0
    %943 = vmatmul.mubr.f32.gmra.mrb[0].mxu0 %v703
    %v944 = vpop.f32.mrb[0].mxu0
    %v945 = vadd.f32 %v726, %v944
    %v946 = vpop.f32.mrb[0].mxu0
    %947 = vmatprep.mubr.f32.mxu0 0.0
    %948 = vmatmul.mubr.f32.gmra.mrb[0].mxu0 %v704
    %v949 = vpop.f32.mrb[0].mxu0
    %v950 = vadd.f32 %v726, %v949
    %v951 = vpop.f32.mrb[0].mxu0
    %952 = vdwg.mxu0
    %953 = vst [vmem:[#allocation2] sm:$0xff] %v795
    %954 = vst [vmem:[#allocation2 + $0x8] sm:$0xff] %v800
    %955 = vst [vmem:[#allocation2 + $0x10] sm:$0xff] %v805
    %956 = vst [vmem:[#allocation2 + $0x18] sm:$0xff] %v810
    %957 = vst [vmem:[#allocation2 + $0x20] sm:$0xff] %v815
    %958 = vst [vmem:[#allocation2 + $0x28] sm:$0xff] %v820
    %959 = vst [vmem:[#allocation2 + $0x30] sm:$0xff] %v825
    %960 = vst [vmem:[#allocation2 + $0x38] sm:$0xff] %v830
    %961 = vst [vmem:[#allocation2 + $0x40] sm:$0xff] %v835
    %962 = vst [vmem:[#allocation2 + $0x48] sm:$0xff] %v840
    %963 = vst [vmem:[#allocation2 + $0x50] sm:$0xff] %v845
    %964 = vst [vmem:[#allocation2 + $0x58] sm:$0xff] %v850
    %965 = vst [vmem:[#allocation2 + $0x60] sm:$0xff] %v855
    %966 = vst [vmem:[#allocation2 + $0x68] sm:$0xff] %v860
    %967 = vst [vmem:[#allocation2 + $0x70] sm:$0xff] %v865
    %968 = vst [vmem:[#allocation2 + $0x78] sm:$0xff] %v870
    %969 = vst [vmem:[#allocation2 + $0x80] sm:$0xff] %v875
    %970 = vst [vmem:[#allocation2 + $0x88] sm:$0xff] %v880
    %971 = vst [vmem:[#allocation2 + $0x90] sm:$0xff] %v885
    %972 = vst [vmem:[#allocation2 + $0x98] sm:$0xff] %v890
    %973 = vst [vmem:[#allocation2 + $0xa0] sm:$0xff] %v895
    %974 = vst [vmem:[#allocation2 + $0xa8] sm:$0xff] %v900
    %975 = vst [vmem:[#allocation2 + $0xb0] sm:$0xff] %v905
    %976 = vst [vmem:[#allocation2 + $0xb8] sm:$0xff] %v910
    %977 = vst [vmem:[#allocation2 + $0xc0] sm:$0xff] %v915
    %978 = vst [vmem:[#allocation2 + $0xc8] sm:$0xff] %v920
    %979 = vst [vmem:[#allocation2 + $0xd0] sm:$0xff] %v925
    %980 = vst [vmem:[#allocation2 + $0xd8] sm:$0xff] %v930
    %981 = vst [vmem:[#allocation2 + $0xe0] sm:$0xff] %v935
    %982 = vst [vmem:[#allocation2 + $0xe8] sm:$0xff] %v940
    %983 = vst [vmem:[#allocation2 + $0xf0] sm:$0xff] %v945
    %984 = vst [vmem:[#allocation2 + $0xf8] sm:$0xff] %v950
    // Predicated region
    $region30: #{tpu_custom_call.1} parent=1 // pred_check
      _
    $region31: #{tpu_custom_call.1} parent=1 // pred_check_branch
      %986 = sbr.rel (0) target = $region33
    $region32: #{tpu_custom_call.1} parent=1 // pred_region
      %s988 = ssub.s32 4096, 4096
      %989 = vsyncadd [#allocation3], %s988
      %s990 = sshll.u32 [#allocation2], 4
      %s991 = int_to_ptr.vmem [resolvable:$true] %s990
      %996 = dma.vmem_to_hbm [thread:$0]  %s991, 4096, %s7, [#allocation3], 128, 128, 8
    $region33: #{tpu_custom_call.1} parent=1 // pred_fallthru
      _
    // Predicated region
    $region34: #{tpu_custom_call.1} parent=1 // pred_check
      _
    $region35: #{tpu_custom_call.1} parent=1 // pred_check_branch
      %998 = sbr.rel (0) target = $region37
    $region36: #{tpu_custom_call.1} parent=1 // pred_region
      %999 = dma.done [#allocation3], 4096
    $region37: #{tpu_custom_call.1} parent=1 // pred_fallthru
      _
    %1000 = vsyncpa [#allocation3], 1

</llo_original>
